<compile_context>
chip_gen: v6e
topology: v6e:2x2x1
jax: 0.10.0
libtpu: 0.0.40
codegen_flags: <defaults>
</compile_context>

<pallas_src>
from functools import partial

import jax
import jax.numpy as jnp
from jax.experimental import pallas as pl
from jax.experimental.pallas import tpu as pltpu

IN_FEATURES = 6
HIDDEN = 64
HIDDEN_PAD = 128  # pad hidden dim to a full 128-lane vreg row (zeros -> exact)
NUM_ACTIONS = 6   # len(['move_forward','jump','look_left','look_right','chat','none'])

_LANE = 128
_VMEM_BUDGET = 24 * 1024 * 1024      # per-step working-set budget (fits all gens)
_VMEM_LIMIT_CAP = 32 * 1024 * 1024   # never ask for more scoped VMEM than this


def mlp_kernel(x_ref, w1t_ref, b1_ref, w2t_ref, b2_ref, out_ref):
    """One batch tile, (features, batch) layout — everything lane-dense.

    x_ref:   (6, tb)    input features x batch tile (batch on the lane axis)
    w1t_ref: (128, 6)   layer-1 weights, hidden zero-padded 64 -> 128
    b1_ref:  (128, 1)   layer-1 bias (f32), lane-broadcast
    w2t_ref: (6, 128)   layer-2 weights
    b2_ref:  (6, 1)     layer-2 bias (f32), lane-broadcast
    out_ref: (6, tb)    logits
    """
    # (128, 6) @ (6, tb) -> (128, tb); MXU with f32 accumulation.
    h = jnp.dot(w1t_ref[...], x_ref[...], preferred_element_type=jnp.float32)
    h = jnp.maximum(h + b1_ref[...], 0.0)
    # (6, 128) @ (128, tb) -> (6, tb); MXU with f32 accumulation.
    y = jnp.dot(w2t_ref[...], h.astype(w2t_ref.dtype),
                preferred_element_type=jnp.float32)
    out_ref[...] = (y + b2_ref[...]).astype(out_ref.dtype)


def _vmem_bytes_estimate(tb, x_itemsize):
    x_blk = 8 * tb * x_itemsize          # (6, tb) block pads to 8 sublanes
    o_blk = 8 * tb * 4                   # f32 output block
    h_tmp = HIDDEN_PAD * tb * 4          # (128, tb) f32 intermediate
    params = 64 * 1024
    # double-buffered x/out, up to ~3 live copies of the hidden temporary.
    return 2 * (x_blk + o_blk) + 3 * h_tmp + params + (1 << 20)


def _pick_tile(batch, block_b, x_itemsize):
    tb = max(_LANE, (block_b // _LANE) * _LANE)
    while tb > _LANE and _vmem_bytes_estimate(tb, x_itemsize) > _VMEM_BUDGET:
        tb = max(_LANE, (tb // 2 // _LANE) * _LANE)
    if batch <= tb:
        # Single full-extent block (block dims equal to the array dims are
        # always legal, even when batch is not a multiple of 128).
        tb = batch
    return tb


def _forward_t(x_t, w1t, b1p, w2t, b2p, *, block_b):
    """Core kernel call; x_t is (6, B), returns (6, B) f32 logits."""
    nf, batch = x_t.shape
    assert nf == IN_FEATURES
    itemsize = jnp.dtype(x_t.dtype).itemsize
    tb = _pick_tile(batch, block_b, itemsize)
    grid = (pl.cdiv(batch, tb),)
    vmem_limit = int(min(_VMEM_LIMIT_CAP,
                         max(_vmem_bytes_estimate(tb, itemsize), 4 << 20)))

    flops = 2 * batch * (IN_FEATURES * HIDDEN_PAD + HIDDEN_PAD * NUM_ACTIONS)
    bytes_accessed = (x_t.size * itemsize
                      + batch * NUM_ACTIONS * 4
                      + w1t.size * jnp.dtype(w1t.dtype).itemsize
                      + w2t.size * jnp.dtype(w2t.dtype).itemsize
                      + (b1p.size + b2p.size) * 4)

    return pl.pallas_call(
        mlp_kernel,
        out_shape=jax.ShapeDtypeStruct((NUM_ACTIONS, batch), jnp.float32),
        grid_spec=pl.GridSpec(
            grid=grid,
            in_specs=[
                # x: tiled over the batch (lane) axis.
                pl.BlockSpec((IN_FEATURES, tb), lambda i: (0, i)),
                # params: constant index_map -> fetched once, VMEM-resident.
                pl.BlockSpec((HIDDEN_PAD, IN_FEATURES), lambda i: (0, 0)),
                pl.BlockSpec((HIDDEN_PAD, 1), lambda i: (0, 0)),
                pl.BlockSpec((NUM_ACTIONS, HIDDEN_PAD), lambda i: (0, 0)),
                pl.BlockSpec((NUM_ACTIONS, 1), lambda i: (0, 0)),
            ],
            out_specs=pl.BlockSpec((NUM_ACTIONS, tb), lambda i: (0, i)),
        ),
        compiler_params=pltpu.CompilerParams(
            dimension_semantics=("parallel",),   # lets v7x shard steps across TCs
            vmem_limit_bytes=vmem_limit,
        ),
        cost_estimate=pl.CostEstimate(
            flops=flops, transcendentals=0, bytes_accessed=bytes_accessed),
    )(x_t, w1t, b1p, w2t, b2p)


def prepare_params(w1, b1, w2, b2, *, param_dtype=jnp.float32):
    """One-time parameter prep (hoisted out of the per-call path).

    Inputs are in [in, out] layout: w1 (6,64), b1 (1,64), w2 (64,6), b2 (1,6).
    Pads hidden 64 -> 128 (zeros: numerically exact), transposes to the kernel's
    (out, in) layout, and optionally casts weights to bf16.  Biases stay f32
    because they are added to f32 MXU accumulators in the kernel.
    """
    w1t = jnp.pad(jnp.transpose(w1),
                  ((0, HIDDEN_PAD - HIDDEN), (0, 0))).astype(param_dtype)   # (128, 6)
    b1p = jnp.pad(jnp.reshape(b1, (HIDDEN, 1)),
                  ((0, HIDDEN_PAD - HIDDEN), (0, 0))).astype(jnp.float32)   # (128, 1)
    w2t = jnp.pad(jnp.transpose(w2),
                  ((0, 0), (0, HIDDEN_PAD - HIDDEN))).astype(param_dtype)   # (6, 128)
    b2p = jnp.reshape(b2, (NUM_ACTIONS, 1)).astype(jnp.float32)             # (6, 1)
    return w1t, b1p, w2t, b2p


def ai_model_forward(x, params, *, block_b=8192):
    """AIModel forward. x: (B, 6) -> (B, 6) f32 logits.

    `params` comes from prepare_params().  With param_dtype=float32 the result
    matches the PyTorch module; with bfloat16, x is cast to bf16 in HBM (half
    the input DMA bytes) while accumulation/bias/ReLU stay f32.
    """
    w1t, b1p, w2t, b2p = params
    # Layout plumbing: batch onto the 128-lane axis (lane-dense blocks).
    x_t = jnp.transpose(x).astype(w1t.dtype)
    out_t = _forward_t(x_t, w1t, b1p, w2t, b2p, block_b=block_b)
    return jnp.transpose(out_t)


def init_params(key):
    """Deterministic init matching nn.Linear default U(-1/sqrt(fan_in), +1/sqrt(fan_in))."""
    k1, k2, k3, k4 = jax.random.split(key, 4)
    bound1 = 1.0 / jnp.sqrt(jnp.float32(IN_FEATURES))
    bound2 = 1.0 / jnp.sqrt(jnp.float32(HIDDEN))
    w1 = jax.random.uniform(k1, (IN_FEATURES, HIDDEN), jnp.float32, -bound1, bound1)
    b1 = jax.random.uniform(k2, (1, HIDDEN), jnp.float32, -bound1, bound1)
    w2 = jax.random.uniform(k3, (HIDDEN, NUM_ACTIONS), jnp.float32, -bound2, bound2)
    b2 = jax.random.uniform(k4, (1, NUM_ACTIONS), jnp.float32, -bound2, bound2)
    return w1, b1, w2, b2


if __name__ == "__main__":
    key = jax.random.PRNGKey(0)
    pkey, xkey1, xkey2 = jax.random.split(key, 3)
    w1, b1, w2, b2 = init_params(pkey)
    params = prepare_params(w1, b1, w2, b2)  # f32: forward matches PyTorch exactly

    def ref_fn(x):
        return jnp.maximum(x @ w1 + b1, 0.0) @ w2 + b2

    fwd = jax.jit(partial(ai_model_forward, block_b=8192))
    fwd_tiled = jax.jit(partial(ai_model_forward, block_b=128))

    # Small ragged batch (not a multiple of 8/128): single full-extent block.
    batch = 10
    x = jax.random.normal(xkey1, (batch, IN_FEATURES), jnp.float32)
    out = jax.block_until_ready(fwd(x, params))
    assert out.shape == (batch, NUM_ACTIONS)
    assert jnp.allclose(out, ref_fn(x), atol=1e-5, rtol=1e-5), "mismatch (single block)"

    # Larger ragged batch with a small tile: multi-step grid + masked last block.
    batch2 = 300
    x2 = jax.random.normal(xkey2, (batch2, IN_FEATURES), jnp.float32)
    out2 = jax.block_until_ready(fwd_tiled(x2, params))
    assert out2.shape == (batch2, NUM_ACTIONS)
    assert jnp.allclose(out2, ref_fn(x2), atol=1e-5, rtol=1e-5), "mismatch (tiled/ragged)"

    print("KERNEL_OK")
</pallas_src>

<mosaic_0001>
module attributes {stable_mosaic.version = 11 : i64} {
  func.func @mlp_kernel(%arg0: i32, %arg1: memref<6x10xf32, #tpu.memory_space<vmem>>, %arg2: memref<128x6xf32, #tpu.memory_space<vmem>>, %arg3: memref<128x1xf32, #tpu.memory_space<vmem>>, %arg4: memref<6x128xf32, #tpu.memory_space<vmem>>, %arg5: memref<6x1xf32, #tpu.memory_space<vmem>>, %arg6: memref<6x10xf32, #tpu.memory_space<vmem>>) attributes {dimension_semantics = [#tpu.dimension_semantics<parallel>], iteration_bounds = array<i64: 1>, scalar_prefetch = 0 : i64, scratch_operands = 0 : i64, tpu.core_type = #tpu.core_type<tc>, window_params = [{transform_indices = @transform_0, window_bounds = array<i64: 6, 10>}, {pipeline_mode = #tpu.pipeline_mode<synchronous>, transform_indices = @transform_1, window_bounds = array<i64: 128, 6>}, {pipeline_mode = #tpu.pipeline_mode<synchronous>, transform_indices = @transform_2, window_bounds = array<i64: 128, 1>}, {pipeline_mode = #tpu.pipeline_mode<synchronous>, transform_indices = @transform_3, window_bounds = array<i64: 6, 128>}, {pipeline_mode = #tpu.pipeline_mode<synchronous>, transform_indices = @transform_4, window_bounds = array<i64: 6, 1>}, {transform_indices = @transform_5, window_bounds = array<i64: 6, 10>}]} {
    %c0 = arith.constant 0 : index
    %c0_0 = arith.constant 0 : index
    %0 = vector.load %arg2[%c0, %c0_0] : memref<128x6xf32, #tpu.memory_space<vmem>>, vector<128x6xf32>
    %c0_1 = arith.constant 0 : index
    %c0_2 = arith.constant 0 : index
    %1 = vector.load %arg1[%c0_1, %c0_2] : memref<6x10xf32, #tpu.memory_space<vmem>>, vector<6x10xf32>
    %cst = arith.constant dense<0.000000e+00> : vector<128x10xf32>
    %2 = tpu.matmul %0, %1, %cst {dimension_numbers = #tpu.dot_dimension_numbers<[1], [0], [0], [1], [0, 0, 1, 1], [], []>} : vector<128x6xf32>, vector<6x10xf32>, vector<128x10xf32> -> vector<128x10xf32>
    %c0_3 = arith.constant 0 : index
    %c0_4 = arith.constant 0 : index
    %3 = vector.load %arg3[%c0_3, %c0_4] : memref<128x1xf32, #tpu.memory_space<vmem>>, vector<128x1xf32>
    %4 = vector.broadcast %3 : vector<128x1xf32> to vector<128x10xf32>
    %5 = arith.addf %2, %4 : vector<128x10xf32>
    %cst_5 = arith.constant 0.000000e+00 : f32
    %6 = vector.broadcast %cst_5 : f32 to vector<128x10xf32>
    %7 = arith.maximumf %5, %6 : vector<128x10xf32>
    %c0_6 = arith.constant 0 : index
    %c0_7 = arith.constant 0 : index
    %8 = vector.load %arg4[%c0_6, %c0_7] : memref<6x128xf32, #tpu.memory_space<vmem>>, vector<6x128xf32>
    %cst_8 = arith.constant dense<0.000000e+00> : vector<6x10xf32>
    %9 = tpu.matmul %8, %7, %cst_8 {dimension_numbers = #tpu.dot_dimension_numbers<[1], [0], [0], [1], [0, 0, 1, 1], [], []>} : vector<6x128xf32>, vector<128x10xf32>, vector<6x10xf32> -> vector<6x10xf32>
    %c0_9 = arith.constant 0 : index
    %c0_10 = arith.constant 0 : index
    %10 = vector.load %arg5[%c0_9, %c0_10] : memref<6x1xf32, #tpu.memory_space<vmem>>, vector<6x1xf32>
    %11 = vector.broadcast %10 : vector<6x1xf32> to vector<6x10xf32>
    %12 = arith.addf %9, %11 : vector<6x10xf32>
    %c0_11 = arith.constant 0 : index
    %c0_12 = arith.constant 0 : index
    %13 = vector.load %arg6[%c0_11, %c0_12] : memref<6x10xf32, #tpu.memory_space<vmem>>, vector<6x10xf32>
    tpu.vector_store %arg6[%c0_11, %c0_12], %12 {strides = array<i32>} : memref<6x10xf32, #tpu.memory_space<vmem>>, vector<6x10xf32>,
    return
  }
  func.func @transform_0(%arg0: i32) -> (i32, i32) {
    %c0_i32 = arith.constant 0 : i32
    %c0_i32_0 = arith.constant 0 : i32
    return %c0_i32, %arg0 : i32, i32
  }
  func.func @transform_1(%arg0: i32) -> (i32, i32) {
    %c0_i32 = arith.constant 0 : i32
    %c0_i32_0 = arith.constant 0 : i32
    %c0_i32_1 = arith.constant 0 : i32
    return %c0_i32, %c0_i32_0 : i32, i32
  }
  func.func @transform_2(%arg0: i32) -> (i32, i32) {
    %c0_i32 = arith.constant 0 : i32
    %c0_i32_0 = arith.constant 0 : i32
    %c0_i32_1 = arith.constant 0 : i32
    return %c0_i32, %c0_i32_0 : i32, i32
  }
  func.func @transform_3(%arg0: i32) -> (i32, i32) {
    %c0_i32 = arith.constant 0 : i32
    %c0_i32_0 = arith.constant 0 : i32
    %c0_i32_1 = arith.constant 0 : i32
    return %c0_i32, %c0_i32_0 : i32, i32
  }
  func.func @transform_4(%arg0: i32) -> (i32, i32) {
    %c0_i32 = arith.constant 0 : i32
    %c0_i32_0 = arith.constant 0 : i32
    %c0_i32_1 = arith.constant 0 : i32
    return %c0_i32, %c0_i32_0 : i32, i32
  }
  func.func @transform_5(%arg0: i32) -> (i32, i32) {
    %c0_i32 = arith.constant 0 : i32
    %c0_i32_0 = arith.constant 0 : i32
    return %c0_i32, %arg0 : i32, i32
  }
}

</mosaic_0001>

<llo_original>
// kernel: ai_model_forward.1
$region0: #{ai_model_forward.1}
  #allocation0 [shape = 'u32[]', space=smem, size = 0x4, offset = 0x4, fixed_abs, tag = 'smem constant byte address 0x4 - core index']
  #allocation1 [shape = 'u32[144,128]{1,0:T(1,128)}', space=vmem, size = 0x12000, scoped, tag = 'internal scratch']
  %s0 = inlined_call_operand.vmem [shape: f32[6,10], index: 0, kind: input, shape index: {}]
  %s1 = inlined_call_operand.vmem [shape: f32[128,6], index: 1, kind: input, shape index: {}]
  %s2 = inlined_call_operand.vmem [shape: f32[128,1], index: 2, kind: input, shape index: {}]
  %s3 = inlined_call_operand.vmem [shape: f32[6,128], index: 3, kind: input, shape index: {}]
  %s4 = inlined_call_operand.vmem [shape: f32[6,1], index: 4, kind: input, shape index: {}]
  %s5 = inlined_call_operand.hbm [shape: f32[6,10], index: 5, kind: output, shape index: {}]
  %s6 = sld [smem:[#allocation0]]
  $region30: #{ai_model_forward.1} parent=0
    _
  %s8 = ssub.s32 1, %s6
  %s9 = scalar_select 0, %s8, %s6
  $region1: #{ai_model_forward.1} parent=0
    #allocation2 [shape = 'u8[4096]{0}', space=vmem, size = 0x1000, scoped, tag = 'output window, operand 0, single buffered']
    #allocation3 [shape = 's32[1]{0}', space=sflag, size = 0x4, scoped, tag = 'scoped memory for ai_model_forward.1']
    %10 = vsyncpa [#allocation3], 0
    // Predicated region
    $region2: #{ai_model_forward.1} parent=1 // pred_check
      _
    $region3: #{ai_model_forward.1} parent=1 // pred_check_branch
      %12 = sbr.rel (0) target = $region5
    $region4: #{ai_model_forward.1} parent=1 // pred_region
      _
    $region5: #{ai_model_forward.1} parent=1 // pred_fallthru
      _
    // Predicated region
    $region6: #{ai_model_forward.1} parent=1 // pred_check
      _
    $region7: #{ai_model_forward.1} parent=1 // pred_check_branch
      %14 = sbr.rel (0) target = $region9
    $region8: #{ai_model_forward.1} parent=1 // pred_region
      _
    $region9: #{ai_model_forward.1} parent=1 // pred_fallthru
      _
    // Predicated region
    $region10: #{ai_model_forward.1} parent=1 // pred_check
      _
    $region11: #{ai_model_forward.1} parent=1 // pred_check_branch
      %16 = sbr.rel (0) target = $region13
    $region12: #{ai_model_forward.1} parent=1 // pred_region
      _
    $region13: #{ai_model_forward.1} parent=1 // pred_fallthru
      _
    // Predicated region
    $region14: #{ai_model_forward.1} parent=1 // pred_check
      _
    $region15: #{ai_model_forward.1} parent=1 // pred_check_branch
      %18 = sbr.rel (0) target = $region17
    $region16: #{ai_model_forward.1} parent=1 // pred_region
      _
    $region17: #{ai_model_forward.1} parent=1 // pred_fallthru
      _
    // Predicated region
    $region18: #{ai_model_forward.1} parent=1 // pred_check
      _
    $region19: #{ai_model_forward.1} parent=1 // pred_check_branch
      %20 = sbr.rel (0) target = $region21
    $region20: #{ai_model_forward.1} parent=1 // pred_region
      _
    $region21: #{ai_model_forward.1} parent=1 // pred_fallthru
      _
    %v21 = vld [vmem:[%s1] sm:$0xff]
    %v22 = vld [vmem:[%s1 + $0x8] sm:$0xff]
    %v23 = vld [vmem:[%s1 + $0x10] sm:$0xff]
    %v24 = vld [vmem:[%s1 + $0x18] sm:$0xff]
    %v25 = vld [vmem:[%s1 + $0x20] sm:$0xff]
    %v26 = vld [vmem:[%s1 + $0x28] sm:$0xff]
    %v27 = vld [vmem:[%s1 + $0x30] sm:$0xff]
    %v28 = vld [vmem:[%s1 + $0x38] sm:$0xff]
    %v29 = vld [vmem:[%s1 + $0x40] sm:$0xff]
    %v30 = vld [vmem:[%s1 + $0x48] sm:$0xff]
    %v31 = vld [vmem:[%s1 + $0x50] sm:$0xff]
    %v32 = vld [vmem:[%s1 + $0x58] sm:$0xff]
    %v33 = vld [vmem:[%s1 + $0x60] sm:$0xff]
    %v34 = vld [vmem:[%s1 + $0x68] sm:$0xff]
    %v35 = vld [vmem:[%s1 + $0x70] sm:$0xff]
    %v36 = vld [vmem:[%s1 + $0x78] sm:$0xff]
    %v37 = vld [vmem:[%s0] sm:$0x3f]
    %v38 = vld [vmem:[%s2] sm:$0xff]
    %v39 = vld [vmem:[%s2 + $0x8] sm:$0xff]
    %v40 = vld [vmem:[%s2 + $0x10] sm:$0xff]
    %v41 = vld [vmem:[%s2 + $0x18] sm:$0xff]
    %v42 = vld [vmem:[%s2 + $0x20] sm:$0xff]
    %v43 = vld [vmem:[%s2 + $0x28] sm:$0xff]
    %v44 = vld [vmem:[%s2 + $0x30] sm:$0xff]
    %v45 = vld [vmem:[%s2 + $0x38] sm:$0xff]
    %v46 = vld [vmem:[%s2 + $0x40] sm:$0xff]
    %v47 = vld [vmem:[%s2 + $0x48] sm:$0xff]
    %v48 = vld [vmem:[%s2 + $0x50] sm:$0xff]
    %v49 = vld [vmem:[%s2 + $0x58] sm:$0xff]
    %v50 = vld [vmem:[%s2 + $0x60] sm:$0xff]
    %v51 = vld [vmem:[%s2 + $0x68] sm:$0xff]
    %v52 = vld [vmem:[%s2 + $0x70] sm:$0xff]
    %v53 = vld [vmem:[%s2 + $0x78] sm:$0xff]
    %55 = vset.pattern.permute.xlu0 0
    %56 = vperm.xlu0 %55, %v38
    %v57 = vpop.permute.xlu0 %56
    %60 = vset.pattern.permute.xlu0 0
    %61 = vperm.xlu0 %60, %v39
    %v62 = vpop.permute.xlu0 %61
    %65 = vset.pattern.permute.xlu0 0
    %66 = vperm.xlu0 %65, %v40
    %v67 = vpop.permute.xlu0 %66
    %70 = vset.pattern.permute.xlu0 0
    %71 = vperm.xlu0 %70, %v41
    %v72 = vpop.permute.xlu0 %71
    %75 = vset.pattern.permute.xlu0 0
    %76 = vperm.xlu0 %75, %v42
    %v77 = vpop.permute.xlu0 %76
    %80 = vset.pattern.permute.xlu0 0
    %81 = vperm.xlu0 %80, %v43
    %v82 = vpop.permute.xlu0 %81
    %85 = vset.pattern.permute.xlu0 0
    %86 = vperm.xlu0 %85, %v44
    %v87 = vpop.permute.xlu0 %86
    %90 = vset.pattern.permute.xlu0 0
    %91 = vperm.xlu0 %90, %v45
    %v92 = vpop.permute.xlu0 %91
    %95 = vset.pattern.permute.xlu0 0
    %96 = vperm.xlu0 %95, %v46
    %v97 = vpop.permute.xlu0 %96
    %100 = vset.pattern.permute.xlu0 0
    %101 = vperm.xlu0 %100, %v47
    %v102 = vpop.permute.xlu0 %101
    %105 = vset.pattern.permute.xlu0 0
    %106 = vperm.xlu0 %105, %v48
    %v107 = vpop.permute.xlu0 %106
    %110 = vset.pattern.permute.xlu0 0
    %111 = vperm.xlu0 %110, %v49
    %v112 = vpop.permute.xlu0 %111
    %115 = vset.pattern.permute.xlu0 0
    %116 = vperm.xlu0 %115, %v50
    %v117 = vpop.permute.xlu0 %116
    %120 = vset.pattern.permute.xlu0 0
    %121 = vperm.xlu0 %120, %v51
    %v122 = vpop.permute.xlu0 %121
    %125 = vset.pattern.permute.xlu0 0
    %126 = vperm.xlu0 %125, %v52
    %v127 = vpop.permute.xlu0 %126
    %130 = vset.pattern.permute.xlu0 0
    %131 = vperm.xlu0 %130, %v53
    %v132 = vpop.permute.xlu0 %131
    %vm134 = vcmask 48128
    %v136 = vsel %vm134, %v21, 0
    %v139 = vsel %vm134, %v22, 0
    %v142 = vsel %vm134, %v23, 0
    %v145 = vsel %vm134, %v24, 0
    %v148 = vsel %vm134, %v25, 0
    %v151 = vsel %vm134, %v26, 0
    %v154 = vsel %vm134, %v27, 0
    %v157 = vsel %vm134, %v28, 0
    %v160 = vsel %vm134, %v29, 0
    %v163 = vsel %vm134, %v30, 0
    %v166 = vsel %vm134, %v31, 0
    %v169 = vsel %vm134, %v32, 0
    %v172 = vsel %vm134, %v33, 0
    %v175 = vsel %vm134, %v34, 0
    %v178 = vsel %vm134, %v35, 0
    %v181 = vsel %vm134, %v36, 0
    %vm183 = vcmask 1045504
    %v185 = vsel %vm183, %v37, 0
    %187 = vmatprep.subr.mxu0 0.0
    %188 = vmatpush1.msra.mxu0 0.0
    %189 = vmatprep.subr.mxu0 0.0
    %190 = vmatpush1.msra.mxu0 0.0
    %191 = vmatprep.subr.mxu0 0.0
    %192 = vmatpush1.msra.mxu0 0.0
    %193 = vmatprep.subr.mxu0 0.0
    %194 = vmatpush1.msra.mxu0 0.0
    %195 = vmatprep.subr.mxu0 0.0
    %196 = vmatpush1.msra.mxu0 0.0
    %197 = vmatprep.subr.mxu0 0.0
    %198 = vmatpush1.msra.mxu0 0.0
    %199 = vmatprep.subr.mxu0 0.0
    %200 = vmatpush1.msra.mxu0 0.0
    %201 = vmatprep.subr.mxu0 0.0
    %202 = vmatpush1.msra.mxu0 0.0
    %203 = vmatprep.subr.mxu0 0.0
    %204 = vmatpush1.msra.mxu0 0.0
    %205 = vmatprep.subr.mxu0 0.0
    %206 = vmatpush1.msra.mxu0 0.0
    %207 = vmatprep.subr.mxu0 0.0
    %208 = vmatpush1.msra.mxu0 0.0
    %209 = vmatprep.subr.mxu0 0.0
    %210 = vmatpush1.msra.mxu0 0.0
    %211 = vmatprep.subr.mxu0 0.0
    %212 = vmatpush1.msra.mxu0 0.0
    %213 = vmatprep.subr.mxu0 0.0
    %214 = vmatpush1.msra.mxu0 0.0
    %215 = vmatprep.subr.mxu0 0.0
    %216 = vmatpush1.msra.mxu0 0.0
    %217 = vmatprep.subr.mxu0 0.0
    %218 = vmatpush1.msra.mxu0 %v185
    %219 = vmatprep.subr.mxu0 0.0
    %220 = vmatpush2.msra.mxu0 0.0
    %221 = vmatprep.subr.mxu0 0.0
    %222 = vmatpush2.msra.mxu0 0.0
    %223 = vmatprep.subr.mxu0 0.0
    %224 = vmatpush2.msra.mxu0 0.0
    %225 = vmatprep.subr.mxu0 0.0
    %226 = vmatpush2.msra.mxu0 0.0
    %227 = vmatprep.subr.mxu0 0.0
    %228 = vmatpush2.msra.mxu0 0.0
    %229 = vmatprep.subr.mxu0 0.0
    %230 = vmatpush2.msra.mxu0 0.0
    %231 = vmatprep.subr.mxu0 0.0
    %232 = vmatpush2.msra.mxu0 0.0
    %233 = vmatprep.subr.mxu0 0.0
    %234 = vmatpush2.msra.mxu0 0.0
    %235 = vmatprep.subr.mxu0 0.0
    %236 = vmatpush2.msra.mxu0 0.0
    %237 = vmatprep.subr.mxu0 0.0
    %238 = vmatpush2.msra.mxu0 0.0
    %239 = vmatprep.subr.mxu0 0.0
    %240 = vmatpush2.msra.mxu0 0.0
    %241 = vmatprep.subr.mxu0 0.0
    %242 = vmatpush2.msra.mxu0 0.0
    %243 = vmatprep.subr.mxu0 0.0
    %244 = vmatpush2.msra.mxu0 0.0
    %245 = vmatprep.subr.mxu0 0.0
    %246 = vmatpush2.msra.mxu0 0.0
    %247 = vmatprep.subr.mxu0 0.0
    %248 = vmatpush2.msra.mxu0 0.0
    %249 = vmatprep.subr.mxu0 0.0
    %250 = vmatpush2.msra.mxu0 0.0
    %251 = vmatprep.mubr.f32.mxu0 0.0
    %252 = vmatmul.mubr.f32.gmra.mxu0 %v136
    %v253 = vpop.f32.mrf.mxu0
    %v254 = vadd.f32 %v57, %v253
    %v255 = vpop.f32.mrf.mxu0
    %256 = vmatprep.mubr.f32.mxu0 0.0
    %257 = vmatmul.mubr.f32.gmra.mxu0 %v139
    %v258 = vpop.f32.mrf.mxu0
    %v259 = vadd.f32 %v62, %v258
    %v260 = vpop.f32.mrf.mxu0
    %261 = vmatprep.mubr.f32.mxu0 0.0
    %262 = vmatmul.mubr.f32.gmra.mxu0 %v142
    %v263 = vpop.f32.mrf.mxu0
    %v264 = vadd.f32 %v67, %v263
    %v265 = vpop.f32.mrf.mxu0
    %266 = vmatprep.mubr.f32.mxu0 0.0
    %267 = vmatmul.mubr.f32.gmra.mxu0 %v145
    %v268 = vpop.f32.mrf.mxu0
    %v269 = vadd.f32 %v72, %v268
    %v270 = vpop.f32.mrf.mxu0
    %271 = vmatprep.mubr.f32.mxu0 0.0
    %272 = vmatmul.mubr.f32.gmra.mxu0 %v148
    %v273 = vpop.f32.mrf.mxu0
    %v274 = vadd.f32 %v77, %v273
    %v275 = vpop.f32.mrf.mxu0
    %276 = vmatprep.mubr.f32.mxu0 0.0
    %277 = vmatmul.mubr.f32.gmra.mxu0 %v151
    %v278 = vpop.f32.mrf.mxu0
    %v279 = vadd.f32 %v82, %v278
    %v280 = vpop.f32.mrf.mxu0
    %281 = vmatprep.mubr.f32.mxu0 0.0
    %282 = vmatmul.mubr.f32.gmra.mxu0 %v154
    %v283 = vpop.f32.mrf.mxu0
    %v284 = vadd.f32 %v87, %v283
    %v285 = vpop.f32.mrf.mxu0
    %286 = vmatprep.mubr.f32.mxu0 0.0
    %287 = vmatmul.mubr.f32.gmra.mxu0 %v157
    %v288 = vpop.f32.mrf.mxu0
    %v289 = vadd.f32 %v92, %v288
    %v290 = vpop.f32.mrf.mxu0
    %291 = vmatprep.mubr.f32.mxu0 0.0
    %292 = vmatmul.mubr.f32.gmra.mxu0 %v160
    %v293 = vpop.f32.mrf.mxu0
    %v294 = vadd.f32 %v97, %v293
    %v295 = vpop.f32.mrf.mxu0
    %296 = vmatprep.mubr.f32.mxu0 0.0
    %297 = vmatmul.mubr.f32.gmra.mxu0 %v163
    %v298 = vpop.f32.mrf.mxu0
    %v299 = vadd.f32 %v102, %v298
    %v300 = vpop.f32.mrf.mxu0
    %301 = vmatprep.mubr.f32.mxu0 0.0
    %302 = vmatmul.mubr.f32.gmra.mxu0 %v166
    %v303 = vpop.f32.mrf.mxu0
    %v304 = vadd.f32 %v107, %v303
    %v305 = vpop.f32.mrf.mxu0
    %306 = vmatprep.mubr.f32.mxu0 0.0
    %307 = vmatmul.mubr.f32.gmra.mxu0 %v169
    %v308 = vpop.f32.mrf.mxu0
    %v309 = vadd.f32 %v112, %v308
    %v310 = vpop.f32.mrf.mxu0
    %311 = vmatprep.mubr.f32.mxu0 0.0
    %312 = vmatmul.mubr.f32.gmra.mxu0 %v172
    %v313 = vpop.f32.mrf.mxu0
    %v314 = vadd.f32 %v117, %v313
    %v315 = vpop.f32.mrf.mxu0
    %316 = vmatprep.mubr.f32.mxu0 0.0
    %317 = vmatmul.mubr.f32.gmra.mxu0 %v175
    %v318 = vpop.f32.mrf.mxu0
    %v319 = vadd.f32 %v122, %v318
    %v320 = vpop.f32.mrf.mxu0
    %321 = vmatprep.mubr.f32.mxu0 0.0
    %322 = vmatmul.mubr.f32.gmra.mxu0 %v178
    %v323 = vpop.f32.mrf.mxu0
    %v324 = vadd.f32 %v127, %v323
    %v325 = vpop.f32.mrf.mxu0
    %326 = vmatprep.mubr.f32.mxu0 0.0
    %327 = vmatmul.mubr.f32.gmra.mxu0 %v181
    %v328 = vpop.f32.mrf.mxu0
    %v329 = vadd.f32 %v132, %v328
    %v330 = vpop.f32.mrf.mxu0
    %331 = vdwg.mxu0
    %v332 = vmax.f32 %v254, 0.0
    %v333 = vmax.f32 %v259, 0.0
    %v334 = vmax.f32 %v264, 0.0
    %v335 = vmax.f32 %v269, 0.0
    %v336 = vmax.f32 %v274, 0.0
    %v337 = vmax.f32 %v279, 0.0
    %v338 = vmax.f32 %v284, 0.0
    %v339 = vmax.f32 %v289, 0.0
    %v340 = vmax.f32 %v294, 0.0
    %v341 = vmax.f32 %v299, 0.0
    %v342 = vmax.f32 %v304, 0.0
    %v343 = vmax.f32 %v309, 0.0
    %v344 = vmax.f32 %v314, 0.0
    %v345 = vmax.f32 %v319, 0.0
    %v346 = vmax.f32 %v324, 0.0
    %v347 = vmax.f32 %v329, 0.0
    %v348 = vld [vmem:[%s3] sm:$0x3f]
    %v349 = vld [vmem:[%s4] sm:$0x3f]
    %351 = vset.pattern.permute.xlu0 0
    %352 = vperm.xlu0 %351, %v349
    %v353 = vpop.permute.xlu0 %352
    %355 = vmatprep.subr.mxu0 0.0
    %356 = vmatpush1.msra.mxu0 %v347
    %357 = vmatprep.subr.mxu0 0.0
    %358 = vmatpush1.msra.mxu0 %v346
    %359 = vmatprep.subr.mxu0 0.0
    %360 = vmatpush1.msra.mxu0 %v345
    %361 = vmatprep.subr.mxu0 0.0
    %362 = vmatpush1.msra.mxu0 %v344
    %363 = vmatprep.subr.mxu0 0.0
    %364 = vmatpush1.msra.mxu0 %v343
    %365 = vmatprep.subr.mxu0 0.0
    %366 = vmatpush1.msra.mxu0 %v342
    %367 = vmatprep.subr.mxu0 0.0
    %368 = vmatpush1.msra.mxu0 %v341
    %369 = vmatprep.subr.mxu0 0.0
    %370 = vmatpush1.msra.mxu0 %v340
    %371 = vmatprep.subr.mxu0 0.0
    %372 = vmatpush1.msra.mxu0 %v339
    %373 = vmatprep.subr.mxu0 0.0
    %374 = vmatpush1.msra.mxu0 %v338
    %375 = vmatprep.subr.mxu0 0.0
    %376 = vmatpush1.msra.mxu0 %v337
    %377 = vmatprep.subr.mxu0 0.0
    %378 = vmatpush1.msra.mxu0 %v336
    %379 = vmatprep.subr.mxu0 0.0
    %380 = vmatpush1.msra.mxu0 %v335
    %381 = vmatprep.subr.mxu0 0.0
    %382 = vmatpush1.msra.mxu0 %v334
    %383 = vmatprep.subr.mxu0 0.0
    %384 = vmatpush1.msra.mxu0 %v333
    %385 = vmatprep.subr.mxu0 0.0
    %386 = vmatpush1.msra.mxu0 %v332
    %387 = vmatprep.subr.mxu0 0.0
    %388 = vmatpush2.msra.mxu0 0.0
    %389 = vmatprep.subr.mxu0 0.0
    %390 = vmatpush2.msra.mxu0 0.0
    %391 = vmatprep.subr.mxu0 0.0
    %392 = vmatpush2.msra.mxu0 0.0
    %393 = vmatprep.subr.mxu0 0.0
    %394 = vmatpush2.msra.mxu0 0.0
    %395 = vmatprep.subr.mxu0 0.0
    %396 = vmatpush2.msra.mxu0 0.0
    %397 = vmatprep.subr.mxu0 0.0
    %398 = vmatpush2.msra.mxu0 0.0
    %399 = vmatprep.subr.mxu0 0.0
    %400 = vmatpush2.msra.mxu0 0.0
    %401 = vmatprep.subr.mxu0 0.0
    %402 = vmatpush2.msra.mxu0 0.0
    %403 = vmatprep.subr.mxu0 0.0
    %404 = vmatpush2.msra.mxu0 0.0
    %405 = vmatprep.subr.mxu0 0.0
    %406 = vmatpush2.msra.mxu0 0.0
    %407 = vmatprep.subr.mxu0 0.0
    %408 = vmatpush2.msra.mxu0 0.0
    %409 = vmatprep.subr.mxu0 0.0
    %410 = vmatpush2.msra.mxu0 0.0
    %411 = vmatprep.subr.mxu0 0.0
    %412 = vmatpush2.msra.mxu0 0.0
    %413 = vmatprep.subr.mxu0 0.0
    %414 = vmatpush2.msra.mxu0 0.0
    %415 = vmatprep.subr.mxu0 0.0
    %416 = vmatpush2.msra.mxu0 0.0
    %417 = vmatprep.subr.mxu0 0.0
    %418 = vmatpush2.msra.mxu0 0.0
    %419 = vmatprep.mubr.f32.mxu0 0.0
    %420 = vmatmul.mubr.f32.gmra.mxu0 %v348
    %v421 = vpop.f32.mrf.mxu0
    %v422 = vadd.f32 %v353, %v421
    %v423 = vpop.f32.mrf.mxu0
    %424 = vdwg.mxu0
    %vm425 = vcmask 78848
    %426 = vst.msk [vmem:[#allocation2] sm:$0x3f] %vm425, %v422
    // Predicated region
    $region22: #{ai_model_forward.1} parent=1 // pred_check
      _
    $region23: #{ai_model_forward.1} parent=1 // pred_check_branch
      %428 = sbr.rel (0) target = $region25
    $region24: #{ai_model_forward.1} parent=1 // pred_region
      %s430 = ssub.s32 128, 128
      %431 = vsyncadd [#allocation3], %s430
      %s433 = sshll.u32 [#allocation2], 4
      %s434 = int_to_ptr.vmem [resolvable:$true] %s433
      %436 = dma.vmem_to_hbm [thread:$0]  %s434, 128, %s5, [#allocation3]
    $region25: #{ai_model_forward.1} parent=1 // pred_fallthru
      _
    // Predicated region
    $region26: #{ai_model_forward.1} parent=1 // pred_check
      _
    $region27: #{ai_model_forward.1} parent=1 // pred_check_branch
      %438 = sbr.rel (0) target = $region29
    $region28: #{ai_model_forward.1} parent=1 // pred_region
      %439 = dma.done [#allocation3], 128
    $region29: #{ai_model_forward.1} parent=1 // pred_fallthru
      _
    %440 = vsyncpa [#allocation3], 1

</llo_original>
